<compile_context>
chip_gen: v6e
topology: v6e:2x2x1
jax: 0.10.0
libtpu: 0.0.40
codegen_flags: <defaults>
</compile_context>

<pallas_src>
import functools

import jax
import jax.numpy as jnp
from jax.experimental import pallas as pl
from jax.experimental.pallas import tpu as pltpu

_NEG_BIG = -1e30
_LANE = 128


def _lane_width(tile_n):
    return _LANE if tile_n % _LANE == 0 else tile_n


def _supcon_kernel(*refs, tile_m, tile_n, lane_w, inv_temp, loss_scale,
                   use_labels):
    """Online-LSE SupCon tile kernel.

    label mode refs: lab_row[N,1], lab_col[1,N], cnt[N,1], a[N,D], b[N,D],
                     out[N,1], a_sc, m_sc, l_sc, ps_sc (VMEM scratch).
    mask  mode refs: mask[N,N], cnt[N,1], a[N,D], b[N,D], out[N,1], + scratch.
    """
    if use_labels:
        (lab_r_ref, lab_c_ref, cnt_ref, a_ref, b_ref,
         out_ref, a_sc, m_sc, l_sc, ps_sc) = refs
    else:
        (mask_ref, cnt_ref, a_ref, b_ref,
         out_ref, a_sc, m_sc, l_sc, ps_sc) = refs

    i = pl.program_id(0)
    j = pl.program_id(1)
    n_groups = tile_n // lane_w

    @pl.when(j == 0)
    def _init():
        # A's block index is constant in j (tile is resident): cache the
        # 1/temperature-scaled, compute-dtype-cast copy once per row tile
        # instead of redoing the O(tile_m*D) scale every column step.
        a_sc[...] = (a_ref[...].astype(jnp.float32) * inv_temp).astype(a_sc.dtype)
        m_sc[...] = jnp.full_like(m_sc, _NEG_BIG)
        l_sc[...] = jnp.zeros_like(l_sc)
        ps_sc[...] = jnp.zeros_like(ps_sc)

    # A @ B^T on the MXU (bf16 operands by default) with f32 accumulation.
    # Contract last dims of both operands -> no explicit transpose.
    s = jax.lax.dot_general(
        a_sc[...], b_ref[...],
        dimension_numbers=(((1,), (1,)), ((), ())),
        preferred_element_type=jnp.float32)                 # [tile_m, tile_n] f32

    if use_labels:
        pos_full = lab_r_ref[...] == lab_c_ref[...]         # bool [tile_m, tile_n]
        w_full = None
    else:
        pos_full = None
        w_full = mask_ref[...].astype(jnp.float32)          # [tile_m, tile_n]

    def _accumulate(s_eff, pos, w):
        # Lane-wide (tile_m, lane_w) accumulators: per-column-tile updates are
        # pure VALU/EUP; the cross-lane reduce happens only in the finalize.
        m_tile = s_eff[:, 0:lane_w]
        for g in range(1, n_groups):
            m_tile = jnp.maximum(m_tile, s_eff[:, g * lane_w:(g + 1) * lane_w])
        m_prev = m_sc[...]
        m_new = jnp.maximum(m_prev, m_tile)
        alpha = jnp.exp(m_prev - m_new)
        l_part = jnp.zeros_like(m_new)
        ps_part = jnp.zeros_like(m_new)
        for g in range(n_groups):
            lo, hi = g * lane_w, (g + 1) * lane_w
            s_g = s_eff[:, lo:hi]
            l_part = l_part + jnp.exp(s_g - m_new)          # excluded cols -> exp(-inf)=0
            if pos is not None:
                ps_part = ps_part + jnp.where(pos[:, lo:hi], s_g, 0.0)
            else:
                ps_part = ps_part + w[:, lo:hi] * s_g
        m_sc[...] = m_new
        l_sc[...] = alpha * l_sc[...] + l_part
        ps_sc[...] = ps_sc[...] + ps_part

    row0 = i * tile_m
    col0 = j * tile_n
    on_diag = jnp.logical_and(row0 < col0 + tile_n, col0 < row0 + tile_m)

    @pl.when(on_diag)
    def _diag_tile():
        # Only tiles intersecting the diagonal pay for self-contrast masking.
        row_ids = row0 + jax.lax.broadcasted_iota(jnp.int32, (tile_m, 1), 0)
        col_ids = col0 + jax.lax.broadcasted_iota(jnp.int32, (1, tile_n), 1)
        not_self = row_ids != col_ids
        s_eff = jnp.where(not_self, s, _NEG_BIG)
        if use_labels:
            _accumulate(s_eff, jnp.logical_and(pos_full, not_self), None)
        else:
            _accumulate(s_eff, None, jnp.where(not_self, w_full, 0.0))

    @pl.when(jnp.logical_not(on_diag))
    def _off_diag_tile():
        _accumulate(s, pos_full, w_full)

    @pl.when(j == pl.num_programs(1) - 1)
    def _finalize():
        m_lane = m_sc[...]
        m_row = jnp.max(m_lane, axis=1, keepdims=True)      # [tile_m, 1]
        l_row = jnp.sum(l_sc[...] * jnp.exp(m_lane - m_row),
                        axis=1, keepdims=True)
        lse = m_row + jnp.log(l_row)
        ps_row = jnp.sum(ps_sc[...], axis=1, keepdims=True)
        # NOTE: anchors with zero positives produce NaN, matching the PyTorch
        # reference behaviour (known failure mode of the original module).
        mean_log_prob_pos = ps_row / cnt_ref[...] - lse
        out_ref[...] = (-loss_scale * mean_log_prob_pos).astype(out_ref.dtype)


def _vmem_capacity_bytes():
    try:
        info = pltpu.get_tpu_info()
        cap = getattr(info, "vmem_capacity_bytes", None)
        if cap:
            return int(cap)
    except Exception:
        pass
    return 64 * 1024 * 1024  # conservative fallback (v7x per-TC VMEM)


def _estimate_vmem_bytes(tile_m, tile_n, dim, feat_bytes, mask_bytes):
    w = _lane_width(tile_n)
    b = 2 * (tile_m + tile_n) * dim * feat_bytes       # double-buffered A/B blocks
    b += 2 * (2 * tile_m + tile_n) * 4                 # label / cnt blocks
    b += 2 * tile_m * tile_n * mask_bytes              # mask tiles (mask path only)
    b += tile_m * dim * feat_bytes                     # scaled-A scratch
    b += 3 * tile_m * w * 4                            # m / l / ps scratch
    b += 2 * tile_m * 4                                # output block
    b += 3 * tile_m * tile_n * 4                       # headroom for f32 temporaries
    return b


def _choose_tiles(n_total, dim, feat_bytes, mask_bytes, budget):
    def _divisors(cands):
        out = [c for c in cands if c <= n_total and n_total % c == 0]
        return out or [n_total]   # full extent is always a legal block dim

    m_cands = _divisors((512, 256, 128, 64, 32, 16, 8))
    n_cands = _divisors((2048, 1024, 512, 256, 128))
    tile_m, tile_n = m_cands[-1], n_cands[-1]
    done = False
    for tm in m_cands:             # prefer big tile_m: cuts B re-streaming
        for tn in n_cands:         # then big tile_n: cuts grid-step overhead
            if _estimate_vmem_bytes(tm, tn, dim, feat_bytes, mask_bytes) <= budget:
                tile_m, tile_n, done = tm, tn, True
                break
        if done:
            break
    # v7x has 2 TensorCores: keep >= 2 row tiles so the "parallel" axis shards
    # across both cores (harmless extra grid row on 1-TC chips).
    if n_total // tile_m < 2 and tile_m % 16 == 0:
        tile_m //= 2
    return tile_m, tile_n


def supcon_loss(features, labels=None, mask=None,
                temperature=0.07, contrast_mode="all", base_temperature=0.07,
                compute_dtype=jnp.bfloat16, tile_m=None, tile_n=None):
    """JAX/Pallas equivalent of SupConLoss.forward (contrast_mode='all').

    features: [bsz, n_views, ...]  (flattened internally to [bsz, n_views, D])
    labels:   optional [bsz] int labels
    mask:     optional [bsz, bsz] float mask (may be asymmetric)
    Returns a scalar f32 loss.
    """
    if features.ndim < 3:
        raise ValueError("`features` needs to be [bsz, n_views, ...]")
    if features.ndim > 3:
        features = features.reshape(features.shape[0], features.shape[1], -1)
    bsz, n_views, dim = features.shape

    if labels is not None and mask is not None:
        raise ValueError("Cannot define both `labels` and `mask`")
    if contrast_mode == "one":
        # TODO(synk): contrast_mode='one' (single anchor view) not wired through
        # the kernel; only 'all' is implemented.
        raise NotImplementedError("contrast_mode='one' not implemented")
    if contrast_mode != "all":
        raise ValueError(f"Unknown mode: {contrast_mode}")

    n_total = n_views * bsz

    # contrast_feature = cat(unbind(features, 1), 0): view-major [N, D], cast to
    # the MXU compute dtype (bf16 by default: halves feature HBM/VMEM traffic).
    contrast_feature = (jnp.transpose(features, (1, 0, 2))
                        .reshape(n_total, dim).astype(compute_dtype))

    use_labels = mask is None
    if use_labels:
        if labels is None:
            lab = jnp.arange(bsz, dtype=jnp.int32)          # SimCLR == unique labels
        else:
            lab = jnp.asarray(labels).reshape(-1).astype(jnp.int32)
            if lab.shape[0] != bsz:
                raise ValueError("Num of labels does not match num of features")
        # Per-anchor positive count (self excluded), precomputed in the wrapper.
        same = (lab[:, None] == lab[None, :]).astype(jnp.float32)
        cnt_b = n_views * jnp.sum(same, axis=1) - 1.0
        mask_bytes = 0
    else:
        mask32 = jnp.asarray(mask, jnp.float32)
        cnt_b = n_views * jnp.sum(mask32, axis=1) - jnp.diagonal(mask32)
        mask_bytes = 2                                       # streamed as bf16
    cnt_full = jnp.tile(cnt_b, n_views).reshape(n_total, 1).astype(jnp.float32)

    feat_bytes = jnp.dtype(compute_dtype).itemsize
    cap = _vmem_capacity_bytes()
    if tile_m is None or tile_n is None:
        auto_m, auto_n = _choose_tiles(n_total, dim, feat_bytes, mask_bytes,
                                       int(0.45 * cap))
        tile_m = auto_m if tile_m is None else tile_m
        tile_n = auto_n if tile_n is None else tile_n
    if n_total % tile_m or n_total % tile_n:
        raise ValueError("tile sizes must divide n_views * bsz")
    if tile_m != n_total and tile_m % 8:
        raise ValueError("tile_m must be a multiple of 8 (or the full extent)")
    if tile_n != n_total and tile_n % _LANE:
        raise ValueError("tile_n must be a multiple of 128 (or the full extent)")
    lane_w = _lane_width(tile_n)
    grid = (n_total // tile_m, n_total // tile_n)

    if use_labels:
        lab_full = jnp.tile(lab, n_views).astype(jnp.int32)  # view-major [N]
        inputs = (lab_full.reshape(n_total, 1), lab_full.reshape(1, n_total),
                  cnt_full, contrast_feature, contrast_feature)
        in_specs = [
            pl.BlockSpec((tile_m, 1), lambda i, j: (i, 0)),      # row labels
            pl.BlockSpec((1, tile_n), lambda i, j: (0, j)),      # col labels
            pl.BlockSpec((tile_m, 1), lambda i, j: (i, 0)),      # positive counts
            pl.BlockSpec((tile_m, dim), lambda i, j: (i, 0)),    # anchor rows
            pl.BlockSpec((tile_n, dim), lambda i, j: (j, 0)),    # contrast rows
        ]
    else:
        # TODO(synk): stream the bsz x bsz mask with a modular index_map instead
        # of materializing the [N, N] tiling (needs tile | bsz); bf16 already
        # halves the only O(N^2) HBM stream vs f32 while keeping float weights.
        mask_full = jnp.tile(mask32.astype(jnp.bfloat16), (n_views, n_views))
        inputs = (mask_full, cnt_full, contrast_feature, contrast_feature)
        in_specs = [
            pl.BlockSpec((tile_m, tile_n), lambda i, j: (i, j)),
            pl.BlockSpec((tile_m, 1), lambda i, j: (i, 0)),
            pl.BlockSpec((tile_m, dim), lambda i, j: (i, 0)),
            pl.BlockSpec((tile_n, dim), lambda i, j: (j, 0)),
        ]

    est = _estimate_vmem_bytes(tile_m, tile_n, dim, feat_bytes, mask_bytes)
    vmem_limit = int(min(0.8 * cap, max(2 * est + (4 << 20), 32 << 20)))

    kernel = functools.partial(
        _supcon_kernel,
        tile_m=tile_m, tile_n=tile_n, lane_w=lane_w,
        inv_temp=1.0 / float(temperature),
        loss_scale=float(temperature) / float(base_temperature),
        use_labels=use_labels)

    per_anchor = pl.pallas_call(
        kernel,
        out_shape=jax.ShapeDtypeStruct((n_total, 1), jnp.float32),
        grid_spec=pltpu.PrefetchScalarGridSpec(
            num_scalar_prefetch=0,
            grid=grid,
            in_specs=in_specs,
            out_specs=pl.BlockSpec((tile_m, 1), lambda i, j: (i, 0)),
            scratch_shapes=[
                pltpu.VMEM((tile_m, dim), compute_dtype),    # 1/T-scaled A cache
                pltpu.VMEM((tile_m, lane_w), jnp.float32),   # running max (per lane)
                pltpu.VMEM((tile_m, lane_w), jnp.float32),   # running denom
                pltpu.VMEM((tile_m, lane_w), jnp.float32),   # sum(mask * logits)
            ]),
        compiler_params=pltpu.CompilerParams(
            dimension_semantics=("parallel", "arbitrary"),
            vmem_limit_bytes=vmem_limit),
    )(*inputs)

    # loss.view(anchor_count, batch_size).mean() == mean over all anchors.
    return jnp.mean(per_anchor)


def _supcon_loss_ref(features, labels=None, mask=None,
                     temperature=0.07, base_temperature=0.07,
                     matmul_dtype=jnp.float32):
    """Pure-JAX reference mirroring the PyTorch forward (contrast_mode='all').

    matmul_dtype lets the check mirror the kernel's bf16 MXU operands exactly
    (the rest of the math stays in f32, as in the kernel).
    """
    bsz, n_views, _ = features.shape
    feats32 = features.astype(jnp.float32)
    if labels is None and mask is None:
        mask = jnp.eye(bsz, dtype=jnp.float32)
    elif labels is not None:
        labels = labels.reshape(-1, 1)
        mask = (labels == labels.T).astype(jnp.float32)
    else:
        mask = jnp.asarray(mask, jnp.float32)
    cf = jnp.transpose(feats32, (1, 0, 2)).reshape(n_views * bsz, -1)
    cfc = cf.astype(matmul_dtype)
    a = (cfc.astype(jnp.float32) * (1.0 / temperature)).astype(matmul_dtype)
    logits = jnp.dot(a, cfc.T, preferred_element_type=jnp.float32)
    logits = logits - jnp.max(logits, axis=1, keepdims=True)
    n = n_views * bsz
    logits_mask = 1.0 - jnp.eye(n, dtype=jnp.float32)
    mask = jnp.tile(mask, (n_views, n_views)) * logits_mask
    exp_logits = jnp.exp(logits) * logits_mask
    log_prob = logits - jnp.log(jnp.sum(exp_logits, axis=1, keepdims=True))
    mean_log_prob_pos = jnp.sum(mask * log_prob, axis=1) / jnp.sum(mask, axis=1)
    loss = -(temperature / base_temperature) * mean_log_prob_pos
    return jnp.mean(loss)


if __name__ == "__main__":
    key = jax.random.PRNGKey(0)
    kf, kl, km, kf2, kl2 = jax.random.split(key, 5)

    # ---- small shapes: bsz=8, n_views=2, D=128 (N=16) ----
    bsz, n_views, dim = 8, 2, 128
    feats = jax.random.normal(kf, (bsz, n_views, dim), dtype=jnp.float32)
    feats = feats / jnp.linalg.norm(feats, axis=-1, keepdims=True)
    labels = jax.random.randint(kl, (bsz,), 0, 4)

    # f32 compute path (tight check against the pure-JAX reference)
    loss = supcon_loss(feats, labels=labels, compute_dtype=jnp.float32)
    jax.block_until_ready(loss)
    ref = _supcon_loss_ref(feats, labels=labels)
    assert jnp.allclose(loss, ref, atol=1e-4, rtol=1e-4), (loss, ref)

    # bf16 MXU path (checked against a reference using the same bf16 operands)
    loss = supcon_loss(feats, labels=labels)
    jax.block_until_ready(loss)
    ref = _supcon_loss_ref(feats, labels=labels, matmul_dtype=jnp.bfloat16)
    assert jnp.allclose(loss, ref, atol=2e-3, rtol=2e-3), (loss, ref)

    # unsupervised SimCLR path (no labels / mask)
    loss = supcon_loss(feats)
    jax.block_until_ready(loss)
    ref = _supcon_loss_ref(feats, matmul_dtype=jnp.bfloat16)
    assert jnp.allclose(loss, ref, atol=2e-3, rtol=2e-3), (loss, ref)

    # explicit (asymmetric-capable) mask path
    mask_small = (jax.random.uniform(km, (bsz, bsz)) > 0.5).astype(jnp.float32)
    mask_small = jnp.maximum(mask_small, jnp.eye(bsz, dtype=jnp.float32))
    loss = supcon_loss(feats, mask=mask_small)
    jax.block_until_ready(loss)
    ref = _supcon_loss_ref(feats, mask=mask_small, matmul_dtype=jnp.bfloat16)
    assert jnp.allclose(loss, ref, atol=2e-3, rtol=2e-3), (loss, ref)

    # ---- multi-tile: N=256, exercises diag/off-diag gating + online LSE ----
    bsz2, n_views2, dim2 = 128, 2, 128
    feats2 = jax.random.normal(kf2, (bsz2, n_views2, dim2), dtype=jnp.float32)
    feats2 = feats2 / jnp.linalg.norm(feats2, axis=-1, keepdims=True)
    labels2 = jax.random.randint(kl2, (bsz2,), 0, 10)

    # forced rectangular tiles (grid 4x2: diag + off-diag tiles, LSE carry), f32
    loss = supcon_loss(feats2, labels=labels2, compute_dtype=jnp.float32,
                       tile_m=64, tile_n=128)
    jax.block_until_ready(loss)
    ref = _supcon_loss_ref(feats2, labels=labels2)
    assert jnp.allclose(loss, ref, atol=1e-4, rtol=1e-4), (loss, ref)

    # auto-tiled bf16 path
    loss = supcon_loss(feats2, labels=labels2)
    jax.block_until_ready(loss)
    ref = _supcon_loss_ref(feats2, labels=labels2, matmul_dtype=jnp.bfloat16)
    assert jnp.allclose(loss, ref, atol=2e-3, rtol=2e-3), (loss, ref)

    print("KERNEL_OK")
</pallas_src>

<mosaic_0001>
module attributes {stable_mosaic.version = 11 : i64} {
  func.func @_supcon_kernel(%arg0: i32, %arg1: i32, %arg2: memref<8x1xi32, #tpu.memory_space<vmem>>, %arg3: memref<1x16xi32, #tpu.memory_space<vmem>>, %arg4: memref<8x1xf32, #tpu.memory_space<vmem>>, %arg5: memref<8x128xf32, #tpu.memory_space<vmem>>, %arg6: memref<16x128xf32, #tpu.memory_space<vmem>>, %arg7: memref<8x1xf32, #tpu.memory_space<vmem>>, %arg8: memref<8x128xf32, #tpu.memory_space<vmem>>, %arg9: memref<8x16xf32, #tpu.memory_space<vmem>>, %arg10: memref<8x16xf32, #tpu.memory_space<vmem>>, %arg11: memref<8x16xf32, #tpu.memory_space<vmem>>) attributes {dimension_semantics = [#tpu.dimension_semantics<parallel>, #tpu.dimension_semantics<arbitrary>], iteration_bounds = array<i64: 2, 1>, scalar_prefetch = 0 : i64, scratch_operands = 4 : i64, tpu.core_type = #tpu.core_type<tc>, window_params = [{transform_indices = @transform_0, window_bounds = array<i64: 8, 1>}, {transform_indices = @transform_1, window_bounds = array<i64: 1, 16>}, {transform_indices = @transform_2, window_bounds = array<i64: 8, 1>}, {transform_indices = @transform_3, window_bounds = array<i64: 8, 128>}, {transform_indices = @transform_4, window_bounds = array<i64: 16, 128>}, {transform_indices = @transform_5, window_bounds = array<i64: 8, 1>}]} {
    %c0_i32 = arith.constant 0 : i32
    %0 = arith.cmpi eq, %arg1, %c0_i32 : i32
    %1 = arith.extui %0 : i1 to i32
    %c0_i32_0 = arith.constant 0 : i32
    %2 = arith.cmpi ne, %1, %c0_i32_0 : i32
    scf.if %2 {
      %c0_14 = arith.constant 0 : index
      %c0_15 = arith.constant 0 : index
      %26 = vector.load %arg5[%c0_14, %c0_15] : memref<8x128xf32, #tpu.memory_space<vmem>>, vector<8x128xf32>
      %cst_16 = arith.constant 14.2857141 : f32
      %27 = vector.broadcast %cst_16 : f32 to vector<8x128xf32>
      %28 = arith.mulf %26, %27 : vector<8x128xf32>
      %c0_17 = arith.constant 0 : index
      %c0_18 = arith.constant 0 : index
      %29 = vector.load %arg8[%c0_17, %c0_18] : memref<8x128xf32, #tpu.memory_space<vmem>>, vector<8x128xf32>
      tpu.vector_store %arg8[%c0_17, %c0_18], %28 {strides = array<i32>} : memref<8x128xf32, #tpu.memory_space<vmem>>, vector<8x128xf32>,
      %cst_19 = arith.constant -1.000000e+30 : f32
      %30 = vector.broadcast %cst_19 : f32 to vector<8x16xf32>
      %c0_20 = arith.constant 0 : index
      %c0_21 = arith.constant 0 : index
      %31 = vector.load %arg9[%c0_20, %c0_21] : memref<8x16xf32, #tpu.memory_space<vmem>>, vector<8x16xf32>
      tpu.vector_store %arg9[%c0_20, %c0_21], %30 {strides = array<i32>} : memref<8x16xf32, #tpu.memory_space<vmem>>, vector<8x16xf32>,
      %cst_22 = arith.constant 0.000000e+00 : f32
      %32 = vector.broadcast %cst_22 : f32 to vector<8x16xf32>
      %c0_23 = arith.constant 0 : index
      %c0_24 = arith.constant 0 : index
      %33 = vector.load %arg10[%c0_23, %c0_24] : memref<8x16xf32, #tpu.memory_space<vmem>>, vector<8x16xf32>
      tpu.vector_store %arg10[%c0_23, %c0_24], %32 {strides = array<i32>} : memref<8x16xf32, #tpu.memory_space<vmem>>, vector<8x16xf32>,
      %cst_25 = arith.constant 0.000000e+00 : f32
      %34 = vector.broadcast %cst_25 : f32 to vector<8x16xf32>
      %c0_26 = arith.constant 0 : index
      %c0_27 = arith.constant 0 : index
      %35 = vector.load %arg11[%c0_26, %c0_27] : memref<8x16xf32, #tpu.memory_space<vmem>>, vector<8x16xf32>
      tpu.vector_store %arg11[%c0_26, %c0_27], %34 {strides = array<i32>} : memref<8x16xf32, #tpu.memory_space<vmem>>, vector<8x16xf32>,
    } else {
    }
    %c0 = arith.constant 0 : index
    %c0_1 = arith.constant 0 : index
    %3 = vector.load %arg8[%c0, %c0_1] : memref<8x128xf32, #tpu.memory_space<vmem>>, vector<8x128xf32>
    %c0_2 = arith.constant 0 : index
    %c0_3 = arith.constant 0 : index
    %4 = vector.load %arg6[%c0_2, %c0_3] : memref<16x128xf32, #tpu.memory_space<vmem>>, vector<16x128xf32>
    %cst = arith.constant dense<0.000000e+00> : vector<8x16xf32>
    %5 = tpu.matmul %3, %4, %cst {dimension_numbers = #tpu.dot_dimension_numbers<[1], [1], [0], [0], [0, 0, 1, 0], [], []>} : vector<8x128xf32>, vector<16x128xf32>, vector<8x16xf32> -> vector<8x16xf32>
    %c0_4 = arith.constant 0 : index
    %c0_5 = arith.constant 0 : index
    %6 = vector.load %arg2[%c0_4, %c0_5] : memref<8x1xi32, #tpu.memory_space<vmem>>, vector<8x1xi32>
    %c0_6 = arith.constant 0 : index
    %c0_7 = arith.constant 0 : index
    %7 = vector.load %arg3[%c0_6, %c0_7] : memref<1x16xi32, #tpu.memory_space<vmem>>, vector<1x16xi32>
    %8 = vector.broadcast %6 : vector<8x1xi32> to vector<8x16xi32>
    %9 = vector.broadcast %7 : vector<1x16xi32> to vector<8x16xi32>
    %10 = arith.cmpi eq, %8, %9 : vector<8x16xi32>
    %c8_i32 = arith.constant 8 : i32
    %11 = arith.muli %arg0, %c8_i32 : i32
    %c16_i32 = arith.constant 16 : i32
    %12 = arith.muli %arg1, %c16_i32 : i32
    %c16_i32_8 = arith.constant 16 : i32
    %13 = arith.addi %12, %c16_i32_8 : i32
    %14 = arith.cmpi slt, %11, %13 : i32
    %c8_i32_9 = arith.constant 8 : i32
    %15 = arith.addi %11, %c8_i32_9 : i32
    %16 = arith.cmpi slt, %12, %15 : i32
    %17 = arith.andi %14, %16 : i1
    %18 = arith.extui %17 : i1 to i32
    %c0_i32_10 = arith.constant 0 : i32
    %19 = arith.cmpi ne, %18, %c0_i32_10 : i32
    scf.if %19 {
      %26 = tpu.iota {dimensions = array<i32: 0>} : vector<8x1xi32>
      %27 = vector.broadcast %11 : i32 to vector<8x1xi32>
      %28 = arith.addi %27, %26 : vector<8x1xi32>
      %29 = tpu.iota {dimensions = array<i32: 1>} : vector<1x16xi32>
      %30 = vector.broadcast %12 : i32 to vector<1x16xi32>
      %31 = arith.addi %30, %29 : vector<1x16xi32>
      %32 = vector.broadcast %28 : vector<8x1xi32> to vector<8x16xi32>
      %33 = vector.broadcast %31 : vector<1x16xi32> to vector<8x16xi32>
      %34 = arith.cmpi ne, %32, %33 : vector<8x16xi32>
      %cst_14 = arith.constant -1.000000e+30 : f32
      %35 = vector.broadcast %cst_14 : f32 to vector<8x16xf32>
      %36 = arith.select %34, %5, %35 : vector<8x16xi1>, vector<8x16xf32>
      %37 = arith.andi %10, %34 : vector<8x16xi1>
      %c0_15 = arith.constant 0 : index
      %c0_16 = arith.constant 0 : index
      %38 = vector.load %arg9[%c0_15, %c0_16] : memref<8x16xf32, #tpu.memory_space<vmem>>, vector<8x16xf32>
      %39 = arith.maximumf %38, %36 : vector<8x16xf32>
      %40 = arith.subf %38, %39 : vector<8x16xf32>
      %41 = math.exp %40 : vector<8x16xf32>
      %cst_17 = arith.constant 0.000000e+00 : f32
      %42 = vector.broadcast %cst_17 : f32 to vector<8x16xf32>
      %cst_18 = arith.constant 0.000000e+00 : f32
      %43 = vector.broadcast %cst_18 : f32 to vector<8x16xf32>
      %44 = arith.subf %36, %39 : vector<8x16xf32>
      %45 = math.exp %44 : vector<8x16xf32>
      %46 = arith.addf %42, %45 : vector<8x16xf32>
      %cst_19 = arith.constant 0.000000e+00 : f32
      %47 = vector.broadcast %cst_19 : f32 to vector<8x16xf32>
      %48 = arith.select %37, %36, %47 : vector<8x16xi1>, vector<8x16xf32>
      %49 = arith.addf %43, %48 : vector<8x16xf32>
      %c0_20 = arith.constant 0 : index
      %c0_21 = arith.constant 0 : index
      %50 = vector.load %arg9[%c0_20, %c0_21] : memref<8x16xf32, #tpu.memory_space<vmem>>, vector<8x16xf32>
      tpu.vector_store %arg9[%c0_20, %c0_21], %39 {strides = array<i32>} : memref<8x16xf32, #tpu.memory_space<vmem>>, vector<8x16xf32>,
      %c0_22 = arith.constant 0 : index
      %c0_23 = arith.constant 0 : index
      %51 = vector.load %arg10[%c0_22, %c0_23] : memref<8x16xf32, #tpu.memory_space<vmem>>, vector<8x16xf32>
      %52 = arith.mulf %41, %51 : vector<8x16xf32>
      %53 = arith.addf %52, %46 : vector<8x16xf32>
      %c0_24 = arith.constant 0 : index
      %c0_25 = arith.constant 0 : index
      %54 = vector.load %arg10[%c0_24, %c0_25] : memref<8x16xf32, #tpu.memory_space<vmem>>, vector<8x16xf32>
      tpu.vector_store %arg10[%c0_24, %c0_25], %53 {strides = array<i32>} : memref<8x16xf32, #tpu.memory_space<vmem>>, vector<8x16xf32>,
      %c0_26 = arith.constant 0 : index
      %c0_27 = arith.constant 0 : index
      %55 = vector.load %arg11[%c0_26, %c0_27] : memref<8x16xf32, #tpu.memory_space<vmem>>, vector<8x16xf32>
      %56 = arith.addf %55, %49 : vector<8x16xf32>
      %c0_28 = arith.constant 0 : index
      %c0_29 = arith.constant 0 : index
      %57 = vector.load %arg11[%c0_28, %c0_29] : memref<8x16xf32, #tpu.memory_space<vmem>>, vector<8x16xf32>
      tpu.vector_store %arg11[%c0_28, %c0_29], %56 {strides = array<i32>} : memref<8x16xf32, #tpu.memory_space<vmem>>, vector<8x16xf32>,
    } else {
    }
    %true = arith.constant true
    %20 = arith.xori %17, %true : i1
    %21 = arith.extui %20 : i1 to i32
    %c0_i32_11 = arith.constant 0 : i32
    %22 = arith.cmpi ne, %21, %c0_i32_11 : i32
    scf.if %22 {
      %c0_14 = arith.constant 0 : index
      %c0_15 = arith.constant 0 : index
      %26 = vector.load %arg9[%c0_14, %c0_15] : memref<8x16xf32, #tpu.memory_space<vmem>>, vector<8x16xf32>
      %27 = arith.maximumf %26, %5 : vector<8x16xf32>
      %28 = arith.subf %26, %27 : vector<8x16xf32>
      %29 = math.exp %28 : vector<8x16xf32>
      %cst_16 = arith.constant 0.000000e+00 : f32
      %30 = vector.broadcast %cst_16 : f32 to vector<8x16xf32>
      %cst_17 = arith.constant 0.000000e+00 : f32
      %31 = vector.broadcast %cst_17 : f32 to vector<8x16xf32>
      %32 = arith.subf %5, %27 : vector<8x16xf32>
      %33 = math.exp %32 : vector<8x16xf32>
      %34 = arith.addf %30, %33 : vector<8x16xf32>
      %cst_18 = arith.constant 0.000000e+00 : f32
      %35 = vector.broadcast %cst_18 : f32 to vector<8x16xf32>
      %36 = arith.select %10, %5, %35 : vector<8x16xi1>, vector<8x16xf32>
      %37 = arith.addf %31, %36 : vector<8x16xf32>
      %c0_19 = arith.constant 0 : index
      %c0_20 = arith.constant 0 : index
      %38 = vector.load %arg9[%c0_19, %c0_20] : memref<8x16xf32, #tpu.memory_space<vmem>>, vector<8x16xf32>
      tpu.vector_store %arg9[%c0_19, %c0_20], %27 {strides = array<i32>} : memref<8x16xf32, #tpu.memory_space<vmem>>, vector<8x16xf32>,
      %c0_21 = arith.constant 0 : index
      %c0_22 = arith.constant 0 : index
      %39 = vector.load %arg10[%c0_21, %c0_22] : memref<8x16xf32, #tpu.memory_space<vmem>>, vector<8x16xf32>
      %40 = arith.mulf %29, %39 : vector<8x16xf32>
      %41 = arith.addf %40, %34 : vector<8x16xf32>
      %c0_23 = arith.constant 0 : index
      %c0_24 = arith.constant 0 : index
      %42 = vector.load %arg10[%c0_23, %c0_24] : memref<8x16xf32, #tpu.memory_space<vmem>>, vector<8x16xf32>
      tpu.vector_store %arg10[%c0_23, %c0_24], %41 {strides = array<i32>} : memref<8x16xf32, #tpu.memory_space<vmem>>, vector<8x16xf32>,
      %c0_25 = arith.constant 0 : index
      %c0_26 = arith.constant 0 : index
      %43 = vector.load %arg11[%c0_25, %c0_26] : memref<8x16xf32, #tpu.memory_space<vmem>>, vector<8x16xf32>
      %44 = arith.addf %43, %37 : vector<8x16xf32>
      %c0_27 = arith.constant 0 : index
      %c0_28 = arith.constant 0 : index
      %45 = vector.load %arg11[%c0_27, %c0_28] : memref<8x16xf32, #tpu.memory_space<vmem>>, vector<8x16xf32>
      tpu.vector_store %arg11[%c0_27, %c0_28], %44 {strides = array<i32>} : memref<8x16xf32, #tpu.memory_space<vmem>>, vector<8x16xf32>,
    } else {
    }
    %c0_i32_12 = arith.constant 0 : i32
    %23 = arith.cmpi eq, %arg1, %c0_i32_12 : i32
    %24 = arith.extui %23 : i1 to i32
    %c0_i32_13 = arith.constant 0 : i32
    %25 = arith.cmpi ne, %24, %c0_i32_13 : i32
    scf.if %25 {
      %c0_14 = arith.constant 0 : index
      %c0_15 = arith.constant 0 : index
      %26 = vector.load %arg9[%c0_14, %c0_15] : memref<8x16xf32, #tpu.memory_space<vmem>>, vector<8x16xf32>
      %cst_16 = arith.constant dense<0xFF800000> : vector<8xf32>
      %27 = vector.multi_reduction <maximumf>, %26, %cst_16 [1] : vector<8x16xf32> to vector<8xf32>
      %28 = vector.shape_cast %27 : vector<8xf32> to vector<8x1xf32>
      %c0_17 = arith.constant 0 : index
      %c0_18 = arith.constant 0 : index
      %29 = vector.load %arg10[%c0_17, %c0_18] : memref<8x16xf32, #tpu.memory_space<vmem>>, vector<8x16xf32>
      %30 = vector.broadcast %28 : vector<8x1xf32> to vector<8x16xf32>
      %31 = arith.subf %26, %30 : vector<8x16xf32>
      %32 = math.exp %31 : vector<8x16xf32>
      %33 = arith.mulf %29, %32 : vector<8x16xf32>
      %cst_19 = arith.constant dense<0.000000e+00> : vector<8xf32>
      %34 = vector.multi_reduction <add>, %33, %cst_19 [1] : vector<8x16xf32> to vector<8xf32>
      %35 = vector.shape_cast %34 : vector<8xf32> to vector<8x1xf32>
      %36 = math.log %35 : vector<8x1xf32>
      %37 = arith.addf %28, %36 : vector<8x1xf32>
      %c0_20 = arith.constant 0 : index
      %c0_21 = arith.constant 0 : index
      %38 = vector.load %arg11[%c0_20, %c0_21] : memref<8x16xf32, #tpu.memory_space<vmem>>, vector<8x16xf32>
      %cst_22 = arith.constant dense<0.000000e+00> : vector<8xf32>
      %39 = vector.multi_reduction <add>, %38, %cst_22 [1] : vector<8x16xf32> to vector<8xf32>
      %40 = vector.shape_cast %39 : vector<8xf32> to vector<8x1xf32>
      %c0_23 = arith.constant 0 : index
      %c0_24 = arith.constant 0 : index
      %41 = vector.load %arg4[%c0_23, %c0_24] : memref<8x1xf32, #tpu.memory_space<vmem>>, vector<8x1xf32>
      %42 = arith.divf %40, %41 : vector<8x1xf32>
      %43 = arith.subf %42, %37 : vector<8x1xf32>
      %cst_25 = arith.constant -1.000000e+00 : f32
      %44 = vector.broadcast %cst_25 : f32 to vector<8x1xf32>
      %45 = arith.mulf %44, %43 : vector<8x1xf32>
      %c0_26 = arith.constant 0 : index
      %c0_27 = arith.constant 0 : index
      %46 = vector.load %arg7[%c0_26, %c0_27] : memref<8x1xf32, #tpu.memory_space<vmem>>, vector<8x1xf32>
      tpu.vector_store %arg7[%c0_26, %c0_27], %45 {strides = array<i32>} : memref<8x1xf32, #tpu.memory_space<vmem>>, vector<8x1xf32>,
    } else {
    }
    return
  }
  func.func @transform_0(%arg0: i32, %arg1: i32) -> (i32, i32) {
    %c0_i32 = arith.constant 0 : i32
    %c0_i32_0 = arith.constant 0 : i32
    return %arg0, %c0_i32 : i32, i32
  }
  func.func @transform_1(%arg0: i32, %arg1: i32) -> (i32, i32) {
    %c0_i32 = arith.constant 0 : i32
    %c0_i32_0 = arith.constant 0 : i32
    return %c0_i32, %arg1 : i32, i32
  }
  func.func @transform_2(%arg0: i32, %arg1: i32) -> (i32, i32) {
    %c0_i32 = arith.constant 0 : i32
    %c0_i32_0 = arith.constant 0 : i32
    return %arg0, %c0_i32 : i32, i32
  }
  func.func @transform_3(%arg0: i32, %arg1: i32) -> (i32, i32) {
    %c0_i32 = arith.constant 0 : i32
    %c0_i32_0 = arith.constant 0 : i32
    return %arg0, %c0_i32 : i32, i32
  }
  func.func @transform_4(%arg0: i32, %arg1: i32) -> (i32, i32) {
    %c0_i32 = arith.constant 0 : i32
    %c0_i32_0 = arith.constant 0 : i32
    return %arg1, %c0_i32 : i32, i32
  }
  func.func @transform_5(%arg0: i32, %arg1: i32) -> (i32, i32) {
    %c0_i32 = arith.constant 0 : i32
    %c0_i32_0 = arith.constant 0 : i32
    return %arg0, %c0_i32 : i32, i32
  }
}

</mosaic_0001>

<llo_original>
// kernel: tpu_custom_call.1
$region0: #{tpu_custom_call.1}
  #allocation0 [shape = 'u32[]', space=smem, size = 0x4, offset = 0x4, fixed_abs, tag = 'smem constant byte address 0x4 - core index']
  #allocation1 [shape = 'u32[144,128]{1,0:T(1,128)}', space=vmem, size = 0x12000, scoped, tag = 'internal scratch']
  #allocation2 [shape = 'f32[8,128]{1,0:T(8,128)}', space=vmem, size = 0x1000, scoped, tag = 'scratch operand']
  #allocation3 [shape = 'f32[8,16]{1,0:T(8,128)}', space=vmem, size = 0x1000, scoped, tag = 'scratch operand']
  #allocation4 [shape = 'f32[8,16]{1,0:T(8,128)}', space=vmem, size = 0x1000, scoped, tag = 'scratch operand']
  #allocation5 [shape = 'f32[8,16]{1,0:T(8,128)}', space=vmem, size = 0x1000, scoped, tag = 'scratch operand']
  %s0 = inlined_call_operand.vmem [shape: s32[16,1], index: 0, kind: input, shape index: {}]
  %s1 = inlined_call_operand.vmem [shape: s32[1,16], index: 1, kind: input, shape index: {}]
  %s2 = inlined_call_operand.vmem [shape: f32[16,1], index: 2, kind: input, shape index: {}]
  %s3 = inlined_call_operand.vmem [shape: f32[16,128], index: 3, kind: input, shape index: {}]
  %s4 = inlined_call_operand.vmem [shape: f32[16,128], index: 4, kind: input, shape index: {}]
  %s5 = inlined_call_operand.vmem [shape: f32[16,1], index: 5, kind: output, shape index: {}]
  %s6 = sld [smem:[#allocation0]]
  $region69: #{tpu_custom_call.1} parent=0
    _
  %s8 = ssub.s32 1, %s6
  %s9 = scalar_select 0, %s8, %s6
  loop: start=0, step=1, limit=4
  $region2: #{tpu_custom_call.1} parent=0 // loop_pre_header
    _
  $region3: #{tpu_custom_call.1} parent=0 // loop_header
    %s11 = sphi 0, %s15
    %p12 = scmp.ge.s32.totalorder %s11, 4
    %s18 = sphi 0, %s30
    %s19 = sphi 0, %s26
    %s20 = sphi 0, %s18
    %s21 = sphi 0, %s19
    %s22 = sphi 0, %s20
    %s23 = sphi 0, %s21
    %s33 = sphi 0, %s35
    %s36 = sphi 0, %s33
    %s37 = sphi 0, %s36
    %s53 = sphi 0, %s37
    %s59 = sphi 0, %s61
    %s62 = sphi 0, %s59
    %s63 = sphi 0, %s62
    %s79 = sphi 0, %s63
    %s85 = sphi 0, %s87
    %s88 = sphi 0, %s85
    %s89 = sphi 0, %s88
    %s105 = sphi 0, %s89
    %s111 = sphi 0, %s113
    %s114 = sphi 0, %s111
    %s115 = sphi 0, %s114
    %s131 = sphi 0, %s115
    %s137 = sphi 0, %s139
    %s140 = sphi 0, %s137
    %s141 = sphi 0, %s140
    %s157 = sphi 0, %s141
    %s163 = sphi 0, %s165
    %s166 = sphi 0, %s163
    %s167 = sphi 0, %s166
    %s183 = sphi 0, %s167
  $region4: #{tpu_custom_call.1} parent=0 // loop_header_branch
    %14 = sbr.rel (%p12) target = $region8
  $region5: #{tpu_custom_call.1} parent=0 // loop_body
    %s16 = ssub.s32 %s11, 1
    %s17 = ssub.s32 %s11, 2
    %s24 = sadd.s32 1, %s19
    %p25 = scmp.ge.s32.totalorder %s24, 1
    %s26 = scalar_select %p25, 0, %s24
    %s27 = sadd.s32 1, %s18
    %s28 = scalar_select %p25, %s27, %s18
    %p29 = scmp.ge.s32.totalorder %s28, 2
    %s30 = scalar_select %p29, 0, %s28
    %s31 = ssub.s32 %s18, %s30
    %p32 = scmp.eq.s32.totalorder %s31, 0
    %s34 = sadd.s32 %s33, 1
    %s35 = scalar_select %p32, %s33, %s34
    %p38 = pneg %p32
    %p39 = scmp.eq.s32.totalorder %s11, 1
    %p40 = por %p38, %p39
    %p41 = scmp.ne.s32.totalorder %s33, %s36
    %p42 = scmp.eq.s32.totalorder %s11, 0
    %p43 = por %p41, %p42
    %p44 = scmp.ne.s32.totalorder %s33, %s36
    %p45 = scmp.eq.s32.totalorder %s16, 1
    %p46 = por %p44, %p45
    %p47 = scmp.ne.s32.totalorder %s36, %s37
    %p48 = scmp.eq.s32.totalorder %s16, 0
    %p49 = por %p47, %p48
    %p50 = scmp.ne.s32.totalorder %s36, %s37
    %p51 = scmp.eq.s32.totalorder %s17, 1
    %p52 = por %p50, %p51
    %p54 = scmp.ne.s32.totalorder %s37, %s53
    %p55 = scmp.eq.s32.totalorder %s17, 0
    %p56 = por %p54, %p55
    %s57 = ssub.s32 %s19, %s26
    %p58 = scmp.eq.s32.totalorder %s57, 0
    %s60 = sadd.s32 %s59, 1
    %s61 = scalar_select %p58, %s59, %s60
    %p64 = pneg %p58
    %p65 = scmp.eq.s32.totalorder %s11, 1
    %p66 = por %p64, %p65
    %p67 = scmp.ne.s32.totalorder %s59, %s62
    %p68 = scmp.eq.s32.totalorder %s11, 0
    %p69 = por %p67, %p68
    %p70 = scmp.ne.s32.totalorder %s59, %s62
    %p71 = scmp.eq.s32.totalorder %s16, 1
    %p72 = por %p70, %p71
    %p73 = scmp.ne.s32.totalorder %s62, %s63
    %p74 = scmp.eq.s32.totalorder %s16, 0
    %p75 = por %p73, %p74
    %p76 = scmp.ne.s32.totalorder %s62, %s63
    %p77 = scmp.eq.s32.totalorder %s17, 1
    %p78 = por %p76, %p77
    %p80 = scmp.ne.s32.totalorder %s63, %s79
    %p81 = scmp.eq.s32.totalorder %s17, 0
    %p82 = por %p80, %p81
    %s83 = ssub.s32 %s18, %s30
    %p84 = scmp.eq.s32.totalorder %s83, 0
    %s86 = sadd.s32 %s85, 1
    %s87 = scalar_select %p84, %s85, %s86
    %p90 = pneg %p84
    %p91 = scmp.eq.s32.totalorder %s11, 1
    %p92 = por %p90, %p91
    %p93 = scmp.ne.s32.totalorder %s85, %s88
    %p94 = scmp.eq.s32.totalorder %s11, 0
    %p95 = por %p93, %p94
    %p96 = scmp.ne.s32.totalorder %s85, %s88
    %p97 = scmp.eq.s32.totalorder %s16, 1
    %p98 = por %p96, %p97
    %p99 = scmp.ne.s32.totalorder %s88, %s89
    %p100 = scmp.eq.s32.totalorder %s16, 0
    %p101 = por %p99, %p100
    %p102 = scmp.ne.s32.totalorder %s88, %s89
    %p103 = scmp.eq.s32.totalorder %s17, 1
    %p104 = por %p102, %p103
    %p106 = scmp.ne.s32.totalorder %s89, %s105
    %p107 = scmp.eq.s32.totalorder %s17, 0
    %p108 = por %p106, %p107
    %s109 = ssub.s32 %s18, %s30
    %p110 = scmp.eq.s32.totalorder %s109, 0
    %s112 = sadd.s32 %s111, 1
    %s113 = scalar_select %p110, %s111, %s112
    %p116 = pneg %p110
    %p117 = scmp.eq.s32.totalorder %s11, 1
    %p118 = por %p116, %p117
    %p119 = scmp.ne.s32.totalorder %s111, %s114
    %p120 = scmp.eq.s32.totalorder %s11, 0
    %p121 = por %p119, %p120
    %p122 = scmp.ne.s32.totalorder %s111, %s114
    %p123 = scmp.eq.s32.totalorder %s16, 1
    %p124 = por %p122, %p123
    %p125 = scmp.ne.s32.totalorder %s114, %s115
    %p126 = scmp.eq.s32.totalorder %s16, 0
    %p127 = por %p125, %p126
    %p128 = scmp.ne.s32.totalorder %s114, %s115
    %p129 = scmp.eq.s32.totalorder %s17, 1
    %p130 = por %p128, %p129
    %p132 = scmp.ne.s32.totalorder %s115, %s131
    %p133 = scmp.eq.s32.totalorder %s17, 0
    %p134 = por %p132, %p133
    %s135 = ssub.s32 %s19, %s26
    %p136 = scmp.eq.s32.totalorder %s135, 0
    %s138 = sadd.s32 %s137, 1
    %s139 = scalar_select %p136, %s137, %s138
    %p142 = pneg %p136
    %p143 = scmp.eq.s32.totalorder %s11, 1
    %p144 = por %p142, %p143
    %p145 = scmp.ne.s32.totalorder %s137, %s140
    %p146 = scmp.eq.s32.totalorder %s11, 0
    %p147 = por %p145, %p146
    %p148 = scmp.ne.s32.totalorder %s137, %s140
    %p149 = scmp.eq.s32.totalorder %s16, 1
    %p150 = por %p148, %p149
    %p151 = scmp.ne.s32.totalorder %s140, %s141
    %p152 = scmp.eq.s32.totalorder %s16, 0
    %p153 = por %p151, %p152
    %p154 = scmp.ne.s32.totalorder %s140, %s141
    %p155 = scmp.eq.s32.totalorder %s17, 1
    %p156 = por %p154, %p155
    %p158 = scmp.ne.s32.totalorder %s141, %s157
    %p159 = scmp.eq.s32.totalorder %s17, 0
    %p160 = por %p158, %p159
    %s161 = ssub.s32 %s18, %s30
    %p162 = scmp.eq.s32.totalorder %s161, 0
    %s164 = sadd.s32 %s163, 1
    %s165 = scalar_select %p162, %s163, %s164
    %p168 = pneg %p162
    %p169 = scmp.eq.s32.totalorder %s11, 1
    %p170 = por %p168, %p169
    %p171 = scmp.ne.s32.totalorder %s163, %s166
    %p172 = scmp.eq.s32.totalorder %s11, 0
    %p173 = por %p171, %p172
    %p174 = scmp.ne.s32.totalorder %s163, %s166
    %p175 = scmp.eq.s32.totalorder %s16, 1
    %p176 = por %p174, %p175
    %p177 = scmp.ne.s32.totalorder %s166, %s167
    %p178 = scmp.eq.s32.totalorder %s16, 0
    %p179 = por %p177, %p178
    %p180 = scmp.ne.s32.totalorder %s166, %s167
    %p181 = scmp.eq.s32.totalorder %s17, 1
    %p182 = por %p180, %p181
    %p184 = scmp.ne.s32.totalorder %s167, %s183
    %p185 = scmp.eq.s32.totalorder %s17, 0
    %p186 = por %p184, %p185
    %p187 = scmp.le.s32.totalorder 1, %s11
    %p188 = scmp.lt.s32.totalorder %s11, 3
    %p189 = pnand %p187, %p188
    %p190 = pneg %p189
    // Predicated region
    $region9: #{tpu_custom_call.1} parent=5 // pred_check
      _
    $region10: #{tpu_custom_call.1} parent=5 // pred_check_branch
      %192 = sbr.rel (%p189) target = $region12
    $region11: #{tpu_custom_call.1} parent=5 // pred_region
      %s193 = ssub.s32 %s11, 1
      // Predicated region
      $region13: #{tpu_custom_call.1} parent=11 // pred_check
        %p194 = pneg %p75
      $region14: #{tpu_custom_call.1} parent=11 // pred_check_branch
        %196 = sbr.rel (%p194) target = $region16
      $region15: #{tpu_custom_call.1} parent=11 // pred_region
        %p197 = scmp.lt.s32.totalorder %s21, 0
        %s198 = scalar_select %p197, %s21, 0
        %s199 = scalar_lea.vmem %s1, %s198
      $region16: #{tpu_custom_call.1} parent=11 // pred_fallthru
        _
      // Predicated region
      $region17: #{tpu_custom_call.1} parent=11 // pred_check
        %p200 = pneg %p153
      $region18: #{tpu_custom_call.1} parent=11 // pred_check_branch
        %202 = sbr.rel (%p200) target = $region20
      $region19: #{tpu_custom_call.1} parent=11 // pred_region
        %s203 = smul.u32 2, %s21
        %p204 = scmp.lt.s32.totalorder %s203, 1
        %s205 = scalar_select %p204, %s203, 1
        %s206 = smul.addr %s205, 8
        %s207 = scalar_lea.vmem %s4, %s206
        %s208 = smul.u32 2, %s21
      $region20: #{tpu_custom_call.1} parent=11 // pred_fallthru
        _
    $region12: #{tpu_custom_call.1} parent=5 // pred_fallthru
      _
    %p209 = scmp.lt.s32.totalorder %s11, 2
    // Predicated region
    $region21: #{tpu_custom_call.1} parent=5 // pred_check
      %p210 = pneg %p209
    $region22: #{tpu_custom_call.1} parent=5 // pred_check_branch
      %212 = sbr.rel (%p210) target = $region24
    $region23: #{tpu_custom_call.1} parent=5 // pred_region
      // Predicated region
      $region25: #{tpu_custom_call.1} parent=23 // pred_check
        %p213 = pneg %p43
      $region26: #{tpu_custom_call.1} parent=23 // pred_check_branch
        %215 = sbr.rel (%p213) target = $region28
      $region27: #{tpu_custom_call.1} parent=23 // pred_region
        %p216 = scmp.lt.s32.totalorder %s18, 1
        %s217 = scalar_select %p216, %s18, 1
        %s218 = smul.addr %s217, 8
        %s219 = scalar_lea.vmem %s0, %s218
      $region28: #{tpu_custom_call.1} parent=23 // pred_fallthru
        _
      // Predicated region
      $region29: #{tpu_custom_call.1} parent=23 // pred_check
        %p220 = pneg %p95
      $region30: #{tpu_custom_call.1} parent=23 // pred_check_branch
        %222 = sbr.rel (%p220) target = $region32
      $region31: #{tpu_custom_call.1} parent=23 // pred_region
        %p223 = scmp.lt.s32.totalorder %s18, 1
        %s224 = scalar_select %p223, %s18, 1
        %s225 = smul.addr %s224, 8
        %s226 = scalar_lea.vmem %s2, %s225
      $region32: #{tpu_custom_call.1} parent=23 // pred_fallthru
        _
      // Predicated region
      $region33: #{tpu_custom_call.1} parent=23 // pred_check
        %p227 = pneg %p121
      $region34: #{tpu_custom_call.1} parent=23 // pred_check_branch
        %229 = sbr.rel (%p227) target = $region36
      $region35: #{tpu_custom_call.1} parent=23 // pred_region
        %p230 = scmp.lt.s32.totalorder %s18, 1
        %s231 = scalar_select %p230, %s18, 1
        %s232 = smul.addr %s231, 8
        %s233 = scalar_lea.vmem %s3, %s232
      $region36: #{tpu_custom_call.1} parent=23 // pred_fallthru
        _
    $region24: #{tpu_custom_call.1} parent=5 // pred_fallthru
      _
    %p234 = scmp.le.s32.totalorder 1, %s11
    %p235 = scmp.lt.s32.totalorder %s11, 3
    %p236 = pnand %p234, %p235
    %p237 = pneg %p236
    // Predicated region
    $region37: #{tpu_custom_call.1} parent=5 // pred_check
      _
    $region38: #{tpu_custom_call.1} parent=5 // pred_check_branch
      %239 = sbr.rel (%p236) target = $region40
    $region39: #{tpu_custom_call.1} parent=5 // pred_region
      %s240 = ssub.s32 %s11, 1
      %p241 = scmp.lt.s32.totalorder %s20, 1
      %s242 = scalar_select %p241, %s20, 1
      %s243 = smul.addr %s242, 8
      %s244 = scalar_lea.vmem %s0, %s243
      %p245 = pneg %p49
      %p246 = pneg %p46
      %p247 = scmp.lt.s32.totalorder %s21, 0
      %s248 = scalar_select %p247, %s21, 0
      %s249 = scalar_lea.vmem %s1, %s248
      %p250 = pneg %p75
      %p251 = pneg %p72
      %p252 = scmp.lt.s32.totalorder %s20, 1
      %s253 = scalar_select %p252, %s20, 1
      %s254 = smul.addr %s253, 8
      %s255 = scalar_lea.vmem %s2, %s254
      %p256 = pneg %p101
      %p257 = pneg %p98
      %p258 = scmp.lt.s32.totalorder %s20, 1
      %s259 = scalar_select %p258, %s20, 1
      %s260 = smul.addr %s259, 8
      %s261 = scalar_lea.vmem %s3, %s260
      %p262 = pneg %p127
      %p263 = pneg %p124
      %s264 = smul.u32 2, %s21
      %p265 = scmp.lt.s32.totalorder %s264, 1
      %s266 = scalar_select %p265, %s264, 1
      %s267 = smul.addr %s266, 8
      %s268 = scalar_lea.vmem %s4, %s267
      %p269 = pneg %p153
      %p270 = pneg %p150
      %p271 = pneg %p179
      %p272 = pneg %p176
      %p273 = scmp.lt.s32.totalorder %s20, 1
      %s274 = scalar_select %p273, %s20, 1
      %s275 = smul.addr %s274, 8
      %s276 = scalar_lea.vmem %s5, %s275
      %p277 = scmp.lt.s32.totalorder %s20, 1
      %s278 = scalar_select %p277, %s20, 1
      %s279 = smul.addr %s278, 8
      %s280 = scalar_lea.vmem %s0, %s279
      %p281 = scmp.lt.s32.totalorder %s21, 0
      %s282 = scalar_select %p281, %s21, 0
      %s283 = scalar_lea.vmem %s1, %s282
      %p284 = scmp.lt.s32.totalorder %s20, 1
      %s285 = scalar_select %p284, %s20, 1
      %s286 = smul.addr %s285, 8
      %s287 = scalar_lea.vmem %s2, %s286
      %p288 = scmp.lt.s32.totalorder %s20, 1
      %s289 = scalar_select %p288, %s20, 1
      %s290 = smul.addr %s289, 8
      %s291 = scalar_lea.vmem %s3, %s290
      %s292 = smul.u32 2, %s21
      %p293 = scmp.lt.s32.totalorder %s292, 1
      %s294 = scalar_select %p293, %s292, 1
      %s295 = smul.addr %s294, 8
      %s296 = scalar_lea.vmem %s4, %s295
      %s297 = smul.u32 2, %s21
      %p298 = scmp.lt.s32.totalorder %s20, 1
      %s299 = scalar_select %p298, %s20, 1
      %s300 = smul.addr %s299, 8
      %s301 = scalar_lea.vmem %s5, %s300
      %p302 = scmp.eq.s32.totalorder %s21, 0
      // Predicated region
      $region41: #{tpu_custom_call.1} parent=39 // pred_check
        %p303 = pneg %p302
      $region42: #{tpu_custom_call.1} parent=39 // pred_check_branch
        %305 = sbr.rel (%p303) target = $region44
      $region43: #{tpu_custom_call.1} parent=39 // pred_region
        %v306 = vld [vmem:[%s291] sm:$0xff]
        %v307 = vmul.f32 %v306, 14.285714
        %308 = vst [vmem:[#allocation2] sm:$0xff] %v307
        %vm309 = vcmask 130048
        %310 = vst.msk [vmem:[#allocation3] sm:$0xff] %vm309, -1e+30
        %311 = vst.msk [vmem:[#allocation4] sm:$0xff] %vm309, 0.0
        %312 = vst.msk [vmem:[#allocation5] sm:$0xff] %vm309, 0.0
      $region44: #{tpu_custom_call.1} parent=39 // pred_fallthru
        _
      %v313 = vld [vmem:[#allocation2] sm:$0xff]
      %v314 = vld [vmem:[%s296] sm:$0xff]
      %v315 = vld [vmem:[%s296 + $0x8] sm:$0xff]
      %316 = vmatprep.subr.mxu0 0.0
      %317 = vmatpush1.xpose.msra.mxu0 0.0
      %318 = vmatprep.subr.mxu0 0.0
      %319 = vmatpush1.xpose.msra.mxu0 0.0
      %320 = vmatprep.subr.mxu0 0.0
      %321 = vmatpush1.xpose.msra.mxu0 0.0
      %322 = vmatprep.subr.mxu0 0.0
      %323 = vmatpush1.xpose.msra.mxu0 0.0
      %324 = vmatprep.subr.mxu0 0.0
      %325 = vmatpush1.xpose.msra.mxu0 0.0
      %326 = vmatprep.subr.mxu0 0.0
      %327 = vmatpush1.xpose.msra.mxu0 0.0
      %328 = vmatprep.subr.mxu0 0.0
      %329 = vmatpush1.xpose.msra.mxu0 0.0
      %330 = vmatprep.subr.mxu0 0.0
      %331 = vmatpush1.xpose.msra.mxu0 0.0
      %332 = vmatprep.subr.mxu0 0.0
      %333 = vmatpush1.xpose.msra.mxu0 0.0
      %334 = vmatprep.subr.mxu0 0.0
      %335 = vmatpush1.xpose.msra.mxu0 0.0
      %336 = vmatprep.subr.mxu0 0.0
      %337 = vmatpush1.xpose.msra.mxu0 0.0
      %338 = vmatprep.subr.mxu0 0.0
      %339 = vmatpush1.xpose.msra.mxu0 0.0
      %340 = vmatprep.subr.mxu0 0.0
      %341 = vmatpush1.xpose.msra.mxu0 0.0
      %342 = vmatprep.subr.mxu0 0.0
      %343 = vmatpush1.xpose.msra.mxu0 0.0
      %344 = vmatprep.subr.mxu0 0.0
      %345 = vmatpush1.xpose.msra.mxu0 %v315
      %346 = vmatprep.subr.mxu0 0.0
      %347 = vmatpush1.xpose.msra.mxu0 %v314
      %348 = vmatprep.subr.mxu0 0.0
      %349 = vmatpush2.xpose.msra.mxu0 0.0
      %350 = vmatprep.subr.mxu0 0.0
      %351 = vmatpush2.xpose.msra.mxu0 0.0
      %352 = vmatprep.subr.mxu0 0.0
      %353 = vmatpush2.xpose.msra.mxu0 0.0
      %354 = vmatprep.subr.mxu0 0.0
      %355 = vmatpush2.xpose.msra.mxu0 0.0
      %356 = vmatprep.subr.mxu0 0.0
      %357 = vmatpush2.xpose.msra.mxu0 0.0
      %358 = vmatprep.subr.mxu0 0.0
      %359 = vmatpush2.xpose.msra.mxu0 0.0
      %360 = vmatprep.subr.mxu0 0.0
      %361 = vmatpush2.xpose.msra.mxu0 0.0
      %362 = vmatprep.subr.mxu0 0.0
      %363 = vmatpush2.xpose.msra.mxu0 0.0
      %364 = vmatprep.subr.mxu0 0.0
      %365 = vmatpush2.xpose.msra.mxu0 0.0
      %366 = vmatprep.subr.mxu0 0.0
      %367 = vmatpush2.xpose.msra.mxu0 0.0
      %368 = vmatprep.subr.mxu0 0.0
      %369 = vmatpush2.xpose.msra.mxu0 0.0
      %370 = vmatprep.subr.mxu0 0.0
      %371 = vmatpush2.xpose.msra.mxu0 0.0
      %372 = vmatprep.subr.mxu0 0.0
      %373 = vmatpush2.xpose.msra.mxu0 0.0
      %374 = vmatprep.subr.mxu0 0.0
      %375 = vmatpush2.xpose.msra.mxu0 0.0
      %376 = vmatprep.subr.mxu0 0.0
      %377 = vmatpush2.xpose.msra.mxu0 0.0
      %378 = vmatprep.subr.mxu0 0.0
      %379 = vmatpush2.xpose.msra.mxu0 0.0
      %380 = vmatprep.mubr.f32.mxu0 0.0
      %381 = vmatmul.mubr.f32.gmra.mxu0 %v313
      %v382 = vpop.f32.mrf.mxu0
      %v383 = vadd.f32 0.0, %v382
      %v384 = vpop.f32.mrf.mxu0
      %385 = vdwg.mxu0
      %v386 = vld [vmem:[%s280] sm:$0xff]
      %v387 = vld [vmem:[%s283] sm:$0x1]
      %388 = vset.pattern.permute.xlu0 0
      %389 = vperm.xlu0 %388, %v386
      %v390 = vpop.permute.xlu0 %389
      %v391 = vlaneseq
      %v392 = vshrl.u32 %v391, 7
      %v393 = vsub.s32 0, %v392
      %v394 = vrot.slane %v387, %v393
      %vm395 = vcmp.eq.s32.totalorder %v390, %v394
      %s396 = smul.u32 %s20, 8
      %s397 = smul.u32 %s21, 16
      %s398 = sadd.s32 %s397, 16
      %p399 = scmp.lt.s32.totalorder %s396, %s398
      %s400 = sadd.s32 %s396, 8
      %p401 = scmp.lt.s32.totalorder %s397, %s400
      %p402 = pnand %p399, %p401
      %p403 = pneg %p402
      // Predicated region
      $region45: #{tpu_custom_call.1} parent=39 // pred_check
        _
      $region46: #{tpu_custom_call.1} parent=39 // pred_check_branch
        %405 = sbr.rel (%p402) target = $region48
      $region47: #{tpu_custom_call.1} parent=39 // pred_region
        %v406 = vlaneseq
        %v407 = vshrl.u32 %v406, 7
        %v408 = vstv %s396
        %v409 = vadd.s32 %v408, %v407
        %v410 = vlaneseq
        %v411 = vand.u32 %v410, 127
        %v412 = vstv %s397
        %v413 = vadd.s32 %v412, %v411
        %vm414 = vcmp.ne.s32.totalorder %v409, %v413
        %v415 = vsel %vm414, %v383, -1e+30
        %vm416 = vmand %vm395, %vm414
        %v417 = vld [vmem:[#allocation3] sm:$0xff]
        %v418 = vmax.f32 %v417, %v415
        %v419 = vsub.f32 %v417, %v418
        %v420 = vmul.f32 %v419, 1.442695
        %v421 = vpow.pop %v420
        %v422 = vsub.f32 %v415, %v418
        %v423 = vmul.f32 %v422, 1.442695
        %v424 = vpow.pop %v423
        %v425 = vadd.f32 %v424, 0.0
        %v426 = vsel %vm416, %v415, 0.0
        %v427 = vadd.f32 %v426, 0.0
        %vm428 = vcmask 130048
        %429 = vst.msk [vmem:[#allocation3] sm:$0xff] %vm428, %v418
        %v430 = vld [vmem:[#allocation4] sm:$0xff]
        %v431 = vmul.f32 %v421, %v430
        %v432 = vadd.f32 %v431, %v425
        %433 = vst.msk [vmem:[#allocation4] sm:$0xff] %vm428, %v432
        %v434 = vld [vmem:[#allocation5] sm:$0xff]
        %v435 = vadd.f32 %v434, %v427
        %436 = vst.msk [vmem:[#allocation5] sm:$0xff] %vm428, %v435
      $region48: #{tpu_custom_call.1} parent=39 // pred_fallthru
        _
      %p437 = pneg %p403
      // Predicated region
      $region49: #{tpu_custom_call.1} parent=39 // pred_check
        _
      $region50: #{tpu_custom_call.1} parent=39 // pred_check_branch
        %439 = sbr.rel (%p403) target = $region52
      $region51: #{tpu_custom_call.1} parent=39 // pred_region
        %v440 = vld [vmem:[#allocation3] sm:$0xff]
        %v441 = vmax.f32 %v440, %v383
        %v442 = vsub.f32 %v440, %v441
        %v443 = vmul.f32 %v442, 1.442695
        %v444 = vpow.pop %v443
        %v445 = vsub.f32 %v383, %v441
        %v446 = vmul.f32 %v445, 1.442695
        %v447 = vpow.pop %v446
        %v448 = vadd.f32 %v447, 0.0
        %v449 = vsel %vm395, %v383, 0.0
        %v450 = vadd.f32 %v449, 0.0
        %vm451 = vcmask 130048
        %452 = vst.msk [vmem:[#allocation3] sm:$0xff] %vm451, %v441
        %v453 = vld [vmem:[#allocation4] sm:$0xff]
        %v454 = vmul.f32 %v444, %v453
        %v455 = vadd.f32 %v454, %v448
        %456 = vst.msk [vmem:[#allocation4] sm:$0xff] %vm451, %v455
        %v457 = vld [vmem:[#allocation5] sm:$0xff]
        %v458 = vadd.f32 %v457, %v450
        %459 = vst.msk [vmem:[#allocation5] sm:$0xff] %vm451, %v458
      $region52: #{tpu_custom_call.1} parent=39 // pred_fallthru
        _
      // Predicated region
      $region53: #{tpu_custom_call.1} parent=39 // pred_check
        %p460 = pneg %p302
      $region54: #{tpu_custom_call.1} parent=39 // pred_check_branch
        %462 = sbr.rel (%p460) target = $region56
      $region55: #{tpu_custom_call.1} parent=39 // pred_region
        %v463 = vld [vmem:[#allocation3] sm:$0xff]
        %vm464 = vcmask 130048
        %v465 = vsel %vm464, %v463, -inf
        %466 = vmax.xlane.f32.xlu0 %v465
        %v467 = vpop.xlane.xlu0 %466
        %v468 = vld [vmem:[#allocation4] sm:$0xff]
        %v469 = vsub.f32 %v463, %v467
        %v470 = vmul.f32 %v469, 1.442695
        %v471 = vpow.pop %v470
        %v472 = vmul.f32 %v468, %v471
        %v473 = vsel %vm464, %v472, 0.0
        %474 = vadd.xlane.f32.xlu0 %v473
        %v475 = vpop.xlane.xlu0 %474
        %v476 = vlog2.pop %v475
        %v477 = vmul.f32 %v476, 0.6931472
        %v478 = vadd.f32 %v467, %v477
        %v479 = vld [vmem:[#allocation5] sm:$0xff]
        %v480 = vsel %vm464, %v479, 0.0
        %481 = vadd.xlane.f32.xlu0 %v480
        %v482 = vpop.xlane.xlu0 %481
        %v483 = vld [vmem:[%s287] sm:$0xff]
        %v484 = vrcp.pop %v483
        %v485 = vmul.f32 %v482, %v484
        %v486 = vsub.f32 %v485, %v478
        %v487 = vmul.f32 %v486, -1.0
        %vm488 = vcmask 7168
        %489 = vst.msk [vmem:[%s301] sm:$0xff] %vm488, %v487
      $region56: #{tpu_custom_call.1} parent=39 // pred_fallthru
        _
      %p490 = scmp.lt.s32.totalorder %s20, 1
      %s491 = scalar_select %p490, %s20, 1
      %s492 = smul.addr %s491, 8
      %s493 = scalar_lea.vmem %s5, %s492
      // Predicated region
      $region57: #{tpu_custom_call.1} parent=39 // pred_check
        %p494 = pneg %p176
      $region58: #{tpu_custom_call.1} parent=39 // pred_check_branch
        %496 = sbr.rel (%p494) target = $region60
      $region59: #{tpu_custom_call.1} parent=39 // pred_region
        _
      $region60: #{tpu_custom_call.1} parent=39 // pred_fallthru
        _
    $region40: #{tpu_custom_call.1} parent=5 // pred_fallthru
      _
    %p497 = scmp.le.s32.totalorder 2, %s11
    // Predicated region
    $region61: #{tpu_custom_call.1} parent=5 // pred_check
      %p498 = pneg %p497
    $region62: #{tpu_custom_call.1} parent=5 // pred_check_branch
      %500 = sbr.rel (%p498) target = $region64
    $region63: #{tpu_custom_call.1} parent=5 // pred_region
      %s501 = ssub.s32 %s11, 2
      // Predicated region
      $region65: #{tpu_custom_call.1} parent=63 // pred_check
        %p502 = pneg %p182
      $region66: #{tpu_custom_call.1} parent=63 // pred_check_branch
        %504 = sbr.rel (%p502) target = $region68
      $region67: #{tpu_custom_call.1} parent=63 // pred_region
        %p505 = scmp.lt.s32.totalorder %s22, 1
        %s506 = scalar_select %p505, %s22, 1
        %s507 = smul.addr %s506, 8
        %s508 = scalar_lea.vmem %s5, %s507
      $region68: #{tpu_custom_call.1} parent=63 // pred_fallthru
        _
    $region64: #{tpu_custom_call.1} parent=5 // pred_fallthru
      _
  $region6: #{tpu_custom_call.1} parent=0 // loop_footer
    %s15 = sadd.s32 1, %s11
  $region7: #{tpu_custom_call.1} parent=0 // loop_footer_branch
    %10 = sbr.rel target = $region3
  $region8: #{tpu_custom_call.1} parent=0 // loop_exit
    _

</llo_original>
